<compile_context>
chip_gen: v5e
topology: v5e:2x2
jax: 0.10.0
libtpu: 0.0.40
codegen_flags: <defaults>
</compile_context>

<pallas_src>
import jax
import jax.numpy as jnp
from jax.experimental import pallas as pl
from jax.experimental.pallas import tpu as pltpu


def _gather_kernel(ids_ref, tbl_hbm, out_ref, sem):
    """One grid step: DMA-gather TB embedding rows from the HBM table into out_ref."""
    b = pl.program_id(0)
    tb = out_ref.shape[0]
    base = b * tb

    # Issue all TB row copies (HBM table row -> one sublane-row of the output block).
    def start_one(i, carry):
        row = ids_ref[base + i]                                     # SMEM scalar read
        pltpu.make_async_copy(tbl_hbm.at[row], out_ref.at[i], sem).start()
        return carry

    jax.lax.fori_loop(0, tb, start_one, 0)

    # Wait for all of them.  Every copy has the identical (E,) row shape, so TB waits with
    # a same-shaped descriptor consume exactly the TB completions on the shared semaphore.
    def wait_one(i, carry):
        pltpu.make_async_copy(tbl_hbm.at[0], out_ref.at[0], sem).wait()
        return carry

    jax.lax.fori_loop(0, tb, wait_one, 0)


def vocab_embedding(ids, table, *, block_tokens=256):
    """Pallas equivalent of nn.Embedding forward: returns table[ids].

    ids:   integer array of any shape (token indices into the vocab).
    table: (vocab_size, embedding_dim) float array (stays in HBM; never fully loaded
           into VMEM, so vocab_size is unconstrained by VMEM capacity).
    """
    v, e = table.shape
    lead_shape = ids.shape

    tb = block_tokens
    assert tb % 8 == 0, "block_tokens must be a multiple of 8 (sublane granularity)"

    flat = ids.reshape(-1).astype(jnp.int32)
    # Clamp so a bad id can never trigger an out-of-bounds DMA (nn.Embedding would error).
    flat = jnp.clip(flat, 0, v - 1)
    n = flat.shape[0]

    n_pad = pl.cdiv(n, tb) * tb
    if n_pad != n:
        flat = jnp.pad(flat, (0, n_pad - n))                        # pad with id 0 (valid row)

    grid_spec = pltpu.PrefetchScalarGridSpec(
        num_scalar_prefetch=1,                                      # ids -> SMEM
        grid=(n_pad // tb,),
        in_specs=[
            pl.BlockSpec(memory_space=pl.ANY),                      # table stays in HBM
        ],
        out_specs=pl.BlockSpec((tb, e), lambda b, ids_sref: (b, 0)),  # lane-dense slab
        scratch_shapes=[pltpu.SemaphoreType.DMA(())],               # one shared DMA sem
    )

    out = pl.pallas_call(
        _gather_kernel,
        out_shape=jax.ShapeDtypeStruct((n_pad, e), table.dtype),
        grid_spec=grid_spec,
        compiler_params=pltpu.CompilerParams(
            dimension_semantics=("parallel",),                      # token blocks independent
        ),
    )(flat, table)

    return out[:n].reshape(*lead_shape, e)


if __name__ == "__main__":
    # Small shapes consistent with the module: batch=4, seq=32 token ids,
    # vocab_size=512, embedding_dim=128.
    B, T = 4, 32
    VOCAB, EMB = 512, 128

    key = jax.random.PRNGKey(0)
    k_ids, k_tbl = jax.random.split(key)
    ids = jax.random.randint(k_ids, (B, T), 0, VOCAB, dtype=jnp.int32)
    table = (0.02 * jax.random.normal(k_tbl, (VOCAB, EMB))).astype(jnp.float32)

    out = vocab_embedding(ids, table, block_tokens=256)
    out = jax.block_until_ready(out)

    assert out.shape == (B, T, EMB), out.shape
    ref = jnp.take(table, ids, axis=0)                              # pure-JAX reference: table[ids]
    assert bool(jnp.all(jnp.isfinite(out)))
    assert bool(jnp.allclose(out, ref, atol=0.0, rtol=0.0)), float(
        jnp.max(jnp.abs(out - ref))
    )
    print("KERNEL_OK")
</pallas_src>

<mosaic_0001>
module attributes {stable_mosaic.version = 11 : i64} {
  func.func @_gather_kernel(%arg0: i32, %arg1: memref<256xi32, #tpu.memory_space<smem>>, %arg2: memref<512x128xf32, #tpu.memory_space<any>>, %arg3: memref<256x128xf32, #tpu.memory_space<vmem>>, %arg4: memref<!tpu.dma_semaphore, #tpu.memory_space<semaphore_mem>>) attributes {dimension_semantics = [#tpu.dimension_semantics<parallel>], iteration_bounds = array<i64: 1>, scalar_prefetch = 1 : i64, scratch_operands = 1 : i64, tpu.core_type = #tpu.core_type<tc>, window_params = [{}, {transform_indices = @transform_1, window_bounds = array<i64: 256, 128>}]} {
    %c256_i32 = arith.constant 256 : i32
    %0 = arith.muli %arg0, %c256_i32 : i32
    %c0_i32 = arith.constant 0 : i32
    %c256_i32_0 = arith.constant 256 : i32
    %1 = arith.addi %c0_i32, %c256_i32_0 : i32
    %c1_i32 = arith.constant 1 : i32
    scf.for %arg5 = %c0_i32 to %1 step %c1_i32  : i32 {
      %3 = arith.addi %0, %arg5 : i32
      %4 = arith.index_cast %3 : i32 to index
      %5 = memref.load %arg1[%4] : memref<256xi32, #tpu.memory_space<smem>>
      %c0_i32_5 = arith.constant 0 : i32
      %6 = tpu.memref_slice %arg2[%5, %c0_i32_5] : memref<512x128xf32, #tpu.memory_space<any>> -> memref<1x128xf32, #tpu.memory_space<any>>
      %7 = tpu.memref_squeeze %6 : memref<1x128xf32, #tpu.memory_space<any>> -> memref<128xf32, #tpu.memory_space<any>>
      %c0_i32_6 = arith.constant 0 : i32
      %8 = tpu.memref_slice %arg3[%arg5, %c0_i32_6] : memref<256x128xf32, #tpu.memory_space<vmem>> -> memref<1x128xf32, #tpu.memory_space<vmem>>
      %9 = tpu.memref_squeeze %8 : memref<1x128xf32, #tpu.memory_space<vmem>> -> memref<128xf32, #tpu.memory_space<vmem>>
      tpu.enqueue_dma source(%7 : memref<128xf32, #tpu.memory_space<any>>) target(%9 : memref<128xf32, #tpu.memory_space<vmem>>) target_semaphore(%arg4 : memref<!tpu.dma_semaphore, #tpu.memory_space<semaphore_mem>>)
    }
    %c256_i32_1 = arith.constant 256 : i32
    %c0_i32_2 = arith.constant 0 : i32
    %c256_i32_3 = arith.constant 256 : i32
    %2 = arith.addi %c0_i32_2, %c256_i32_3 : i32
    %c1_i32_4 = arith.constant 1 : i32
    scf.for %arg5 = %c0_i32_2 to %2 step %c1_i32_4  : i32 {
      %c0_i32_5 = arith.constant 0 : i32
      %c0_i32_6 = arith.constant 0 : i32
      %c0_i32_7 = arith.constant 0 : i32
      %3 = tpu.memref_slice %arg2[%c0_i32_5, %c0_i32_7] : memref<512x128xf32, #tpu.memory_space<any>> -> memref<1x128xf32, #tpu.memory_space<any>>
      %4 = tpu.memref_squeeze %3 : memref<1x128xf32, #tpu.memory_space<any>> -> memref<128xf32, #tpu.memory_space<any>>
      %c0_i32_8 = arith.constant 0 : i32
      %5 = tpu.memref_slice %arg3[%c0_i32_6, %c0_i32_8] : memref<256x128xf32, #tpu.memory_space<vmem>> -> memref<1x128xf32, #tpu.memory_space<vmem>>
      %6 = tpu.memref_squeeze %5 : memref<1x128xf32, #tpu.memory_space<vmem>> -> memref<128xf32, #tpu.memory_space<vmem>>
      tpu.wait_dma2 semaphore(%arg4 : memref<!tpu.dma_semaphore, #tpu.memory_space<semaphore_mem>>) src(%4 : memref<128xf32, #tpu.memory_space<any>>) dst(%6 : memref<128xf32, #tpu.memory_space<vmem>>)
    }
    return
  }
  func.func @transform_1(%arg0: i32, %arg1: memref<256xi32, #tpu.memory_space<smem>>) -> (i32, i32) {
    %c0_i32 = arith.constant 0 : i32
    %c0_i32_0 = arith.constant 0 : i32
    return %arg0, %c0_i32 : i32, i32
  }
}

</mosaic_0001>

<llo_original>
// kernel: tpu_custom_call.1
$region0: #{tpu_custom_call.1}
  #allocation0 [shape = 'u32[]', space=smem, size = 0x4, offset = 0x4, fixed_abs, tag = 'smem constant byte address 0x4 - core index']
  #allocation1 [shape = 'u32[72,128]{1,0:T(1,128)}', space=vmem, size = 0x9000, scoped, tag = 'internal scratch']
  #allocation2 [shape = 's32[1]{0}', space=sflag, size = 0x4, scoped, tag = 'scratch operand']
  #allocation3 [shape = 's32[1]{0}', space=sflag, size = 0x4, scoped, tag = 'scoped memory for tpu_custom_call.1']
  #allocation4 [shape = 'u8[1024]{0}', space=smem, size = 0x400, scoped, tag = 'prefetched SMEM operand 0']
  #allocation7 [shape = 's32[]', space=sflag, size = 0x4, offset = 0, fixed_abs, tag = 'sflag constant byte address 0x0 - dummy sync flag']
  #allocation8 [shape = 's32[]', space=sflag, size = 0x4, offset = 0, fixed_abs, tag = 'sflag constant byte address 0x0 - dummy sync flag']
  #allocation9 [shape = 'u32[]', space=smem, size = 0x4, offset = 0x44, fixed_abs, tag = 'smem constant byte address 0x44 - assertion arg 0']
  #allocation10 [shape = 'u32[]', space=smem, size = 0x4, offset = 0x48, fixed_abs, tag = 'smem constant byte address 0x48 - assertion arg 1']
  %s0 = inlined_call_operand.hbm [shape: s32[256], index: 0, kind: input, shape index: {}]
  %s1 = inlined_call_operand.hbm [shape: f32[512,128], index: 1, kind: input, shape index: {}]
  %s2 = inlined_call_operand.hbm [shape: f32[256,128], index: 2, kind: output, shape index: {}]
  %s3 = sld [smem:[#allocation0]]
  $region28: #{tpu_custom_call.1} parent=0
    _
  %s5 = ssub.s32 1, %s3
  %s6 = scalar_select 0, %s5, %s3
  %s8 = sshll.u32 %s0, 4
  %s9 = int_to_ptr.hbm [resolvable:$true] %s8
  %11 = dma.hbm_to_smem %s9, 32, [#allocation4], [#allocation3]
  %13 = dma.done [#allocation3], 32
  %14 = sfence
  $region1: #{tpu_custom_call.1} parent=0
    #allocation5 [shape = 'u8[131072]{0}', space=vmem, size = 0x20000, scoped, tag = 'output window, operand 0, single buffered']
    #allocation6 [shape = 's32[1]{0}', space=sflag, size = 0x4, scoped, tag = 'scoped memory for tpu_custom_call.1']
    %15 = vsyncpa [#allocation6], 0
    %s16 = smul.u32 0, 256
    loop: start=0, step=1, limit=256
    $region2: #{tpu_custom_call.1} parent=1 // loop_pre_header
      _
    $region3: #{tpu_custom_call.1} parent=1 // loop_header
      %s18 = sphi 0, %s22
      %p19 = scmp.ge.s32.totalorder %s18, 256
    $region4: #{tpu_custom_call.1} parent=1 // loop_header_branch
      %21 = sbr.rel (%p19) target = $region8
    $region5: #{tpu_custom_call.1} parent=1 // loop_body
      %s23 = sadd.s32 %s16, %s18
      %s24 = sld [smem:[#allocation4 + %s23]]
      %s25 = scalar_lea.hbm %s1, %s24
      %s26 = scalar_lea.vmem [#allocation5], %s18
      // Predicated region
      $region9: #{tpu_custom_call.1} parent=5 // pred_check
        _
      $region10: #{tpu_custom_call.1} parent=5 // pred_check_branch
        %28 = sbr.rel target = $region12
      $region11: #{tpu_custom_call.1} parent=5 // pred_region
        %29 = sst [smem:[#allocation9]] [#allocation8]
        %30 = sst [smem:[#allocation10]] [#allocation7]
      $region12: #{tpu_custom_call.1} parent=5 // pred_fallthru
        _
      %32 = shalt.err (0)
      %s34 = sshll.u32 %s25, 4
      %s35 = int_to_ptr.hbm [resolvable:$true] %s34
      %s36 = sshll.u32 %s26, 4
      %s37 = int_to_ptr.vmem [resolvable:$true] %s36
      %39 = dma.hbm_to_vmem [thread:$0]  %s35, 16, %s37, [#allocation2]
    $region6: #{tpu_custom_call.1} parent=1 // loop_footer
      %s22 = sadd.s32 1, %s18
    $region7: #{tpu_custom_call.1} parent=1 // loop_footer_branch
      %17 = sbr.rel target = $region3
    $region8: #{tpu_custom_call.1} parent=1 // loop_exit
      _
    loop: start=0, step=1, limit=256
    $region13: #{tpu_custom_call.1} parent=1 // loop_pre_header
      _
    $region14: #{tpu_custom_call.1} parent=1 // loop_header
      %s41 = sphi 0, %s45
      %p42 = scmp.ge.s32.totalorder %s41, 256
    $region15: #{tpu_custom_call.1} parent=1 // loop_header_branch
      %44 = sbr.rel (%p42) target = $region19
    $region16: #{tpu_custom_call.1} parent=1 // loop_body
      %47 = dma.done [#allocation2], 16
    $region17: #{tpu_custom_call.1} parent=1 // loop_footer
      %s45 = sadd.s32 1, %s41
    $region18: #{tpu_custom_call.1} parent=1 // loop_footer_branch
      %40 = sbr.rel target = $region14
    $region19: #{tpu_custom_call.1} parent=1 // loop_exit
      _
    // Predicated region
    $region20: #{tpu_custom_call.1} parent=1 // pred_check
      _
    $region21: #{tpu_custom_call.1} parent=1 // pred_check_branch
      %49 = sbr.rel (0) target = $region23
    $region22: #{tpu_custom_call.1} parent=1 // pred_region
      %51 = vsyncadd [#allocation6], 0
      %s52 = sshll.u32 [#allocation5], 4
      %s53 = int_to_ptr.vmem [resolvable:$true] %s52
      %s54 = sshll.u32 %s2, 4
      %s55 = int_to_ptr.hbm [resolvable:$true] %s54
      %60 = dma.vmem_to_hbm [thread:$0]  %s53, 4096, %s55, [#allocation6], 128, 128, 8
    $region23: #{tpu_custom_call.1} parent=1 // pred_fallthru
      _
    // Predicated region
    $region24: #{tpu_custom_call.1} parent=1 // pred_check
      _
    $region25: #{tpu_custom_call.1} parent=1 // pred_check_branch
      %62 = sbr.rel (0) target = $region27
    $region26: #{tpu_custom_call.1} parent=1 // pred_region
      %64 = dma.done [#allocation6], 4096
    $region27: #{tpu_custom_call.1} parent=1 // pred_fallthru
      _
    %65 = vsyncpa [#allocation6], 1
  %66 = vsyncmov [#allocation2]
  %s67 = vpop.sfrf %66
  %p68 = scmp.eq.s32.totalorder %s67, 0
  %p69 = pneg %p68
  %71 = shalt.err (%p69)

</llo_original>
